<compile_context>
chip_gen: v6e
topology: v6e:2x2x1
jax: 0.10.0
libtpu: 0.0.40
codegen_flags: <defaults>
</compile_context>

<pallas_src>
import functools

import jax
import jax.numpy as jnp
from jax.experimental import pallas as pl
from jax.experimental.pallas import tpu as pltpu


# --------------------------------------------------------------------------
# Kernel 1: hoisted, non-recurrent projection over row blocks of (seq*batch).
#   pre = (x @ W_emb^T + b_emb) @ W_x^T + b_enc
# --------------------------------------------------------------------------
def _proj_kernel(x_ref, w_embT_ref, b_emb_ref, w_xT_ref, b_enc_ref, out_ref):
    emb = jnp.dot(x_ref[...], w_embT_ref[...],
                  preferred_element_type=jnp.float32) + b_emb_ref[...]
    out_ref[...] = (jnp.dot(emb, w_xT_ref[...],
                            preferred_element_type=jnp.float32)
                    + b_enc_ref[...]).astype(out_ref.dtype)


# --------------------------------------------------------------------------
# Kernel 2: sequential recurrence, T timesteps per grid step.
#   h = tanh(pre[t] + h @ W_h^T)
# --------------------------------------------------------------------------
def _recurrence_kernel(pre_ref, h0_ref, w_hT_ref, out_ref, h_scr):
    blk = pl.program_id(0)

    @pl.when(blk == 0)
    def _():
        h_scr[...] = h0_ref[...].astype(jnp.float32)

    T = pre_ref.shape[0]
    w_hT = w_hT_ref[...]                      # (latent, latent), already (in, out)
    h = h_scr[...]                            # (batch, latent) f32 carry
    hs = []
    for i in range(T):                        # static unroll: only the tiny
        pre_t = pre_ref[i]                    # recurrent matmul + tanh remain on
        h = jnp.tanh(pre_t + jnp.dot(h, w_hT, # the sequential critical path
                                     preferred_element_type=jnp.float32))
        hs.append(h)
    h_scr[...] = h
    # Single lane-dense store: (batch, T*latent), last dim a multiple of >=128.
    out_ref[0] = jnp.concatenate(hs, axis=-1).astype(out_ref.dtype)


def _round_up(x, m):
    return (x + m - 1) // m * m


def _pick_row_block(m_rows, dico, latent, vmem_budget_bytes=8 << 20):
    """Row block for kernel 1: multiple of 8, capped by a VMEM budget
    (double-buffered x block + out block)."""
    per_row = 8 * (dico + latent) + 1          # ~2 bufs * 4 bytes * (in + out)
    rb = min(m_rows, 512, max(8, vmem_budget_bytes // per_row))
    rb = max(8, (rb // 8) * 8)
    return rb


def _pick_time_block(seq, latent, t_max=16):
    """Timesteps per recurrence grid step.  T*latent >= 128 keeps the output
    slab lane-dense; the sequence is padded up to a multiple of T."""
    t = min(seq, t_max)
    # keep the unrolled body small but the output slab >= 128 lanes when possible
    while t * latent < 128 and t < seq and t < t_max:
        t += 1
    return max(t, 1)


@functools.partial(jax.jit, static_argnames=())
def rnn_forward(x, h0, w_emb, b_emb, w_enc, b_enc):
    seq, batch, dico = x.shape
    latent = h0.shape[1]
    emb = w_emb.shape[0]

    # Host-side weight prep (once): split W_enc on the concat boundary
    # (concat order is (emb_t, h)) and pre-transpose everything to (in, out).
    w_embT = w_emb.T                  # (dico, emb)
    w_xT = w_enc[:, :emb].T           # (emb, latent)
    w_hT = w_enc[:, emb:].T           # (latent, latent)
    b_emb2 = b_emb.reshape(1, emb)
    b_enc2 = b_enc.reshape(1, latent)

    full2 = lambda i: (0, 0)

    # ---------------- kernel 1: hoisted projection (row-tiled big matmul) -------
    M = seq * batch
    rb = _pick_row_block(M, dico, latent)
    M_pad = _round_up(M, rb)
    x2d = x.reshape(M, dico)
    if M_pad != M:
        x2d = jnp.pad(x2d, ((0, M_pad - M), (0, 0)))

    pre2d = pl.pallas_call(
        _proj_kernel,
        out_shape=jax.ShapeDtypeStruct((M_pad, latent), jnp.float32),
        grid_spec=pltpu.PrefetchScalarGridSpec(
            num_scalar_prefetch=0,
            grid=(M_pad // rb,),
            in_specs=[
                pl.BlockSpec((rb, dico), lambda i: (i, 0)),    # x rows
                pl.BlockSpec((dico, emb), full2),              # W_emb^T (resident)
                pl.BlockSpec((1, emb), full2),                 # b_emb
                pl.BlockSpec((emb, latent), full2),            # W_x^T
                pl.BlockSpec((1, latent), full2),              # b_enc
            ],
            out_specs=pl.BlockSpec((rb, latent), lambda i: (i, 0)),
        ),
        compiler_params=pltpu.CompilerParams(
            dimension_semantics=("parallel",)),
    )(x2d, w_embT, b_emb2, w_xT, b_enc2)

    pre = pre2d[:M].reshape(seq, batch, latent)

    # ---------------- kernel 2: sequential recurrence ----------------
    T = _pick_time_block(seq, latent)
    seq_pad = _round_up(seq, T)
    if seq_pad != seq:
        # Padded timesteps run *after* all real steps: real outputs unaffected,
        # extra h values are discarded below.
        pre = jnp.pad(pre, ((0, seq_pad - seq), (0, 0), (0, 0)))
    nb = seq_pad // T

    out_folded = pl.pallas_call(
        _recurrence_kernel,
        out_shape=jax.ShapeDtypeStruct((nb, batch, T * latent), x.dtype),
        grid_spec=pltpu.PrefetchScalarGridSpec(
            num_scalar_prefetch=0,
            grid=(nb,),
            in_specs=[
                pl.BlockSpec((T, batch, latent), lambda b: (b, 0, 0)),   # pre block
                pl.BlockSpec((batch, latent), full2),                    # h0 (resident)
                pl.BlockSpec((latent, latent), full2),                   # W_h^T (resident)
            ],
            out_specs=pl.BlockSpec((1, batch, T * latent), lambda b: (b, 0, 0)),
            scratch_shapes=[pltpu.VMEM((batch, latent), jnp.float32)],
        ),
        compiler_params=pltpu.CompilerParams(
            dimension_semantics=("arbitrary",)),
    )(pre, h0, w_hT)

    # Unfold the lane-dense (nb, batch, T*latent) slab back to (seq, batch, latent).
    out = (out_folded.reshape(nb, batch, T, latent)
           .transpose(0, 2, 1, 3)
           .reshape(seq_pad, batch, latent))
    return out[:seq]


def rnn_forward_ref(x, h0, w_emb, b_emb, w_enc, b_enc):
    emb = jnp.einsum('sbd,ed->sbe', x, w_emb) + b_emb

    def step(h, xt):
        cat = jnp.concatenate([xt, h], axis=1)
        h_new = jnp.tanh(cat @ w_enc.T + b_enc)
        return h_new, h_new

    _, hs = jax.lax.scan(step, h0, emb)
    return hs


if __name__ == "__main__":
    seq, batch = 8, 2
    dico_size, latent_size, emb_size = 32, 32, 16

    key = jax.random.PRNGKey(0)
    k = jax.random.split(key, 7)
    x = jax.random.normal(k[0], (seq, batch, dico_size), jnp.float32)
    h0 = jax.random.normal(k[1], (batch, latent_size), jnp.float32)
    w_emb = jax.random.normal(k[2], (emb_size, dico_size), jnp.float32) * 0.1
    b_emb = jax.random.normal(k[3], (emb_size,), jnp.float32) * 0.1
    w_enc = jax.random.normal(k[4], (latent_size, emb_size + latent_size), jnp.float32) * 0.1
    b_enc = jax.random.normal(k[5], (latent_size,), jnp.float32) * 0.1

    out = rnn_forward(x, h0, w_emb, b_emb, w_enc, b_enc)
    out = jax.block_until_ready(out)

    ref = rnn_forward_ref(x, h0, w_emb, b_emb, w_enc, b_enc)
    assert out.shape == (seq, batch, latent_size)
    assert jnp.allclose(out, ref, atol=1e-4, rtol=1e-4)

    print("KERNEL_OK")
</pallas_src>

<mosaic_0001>
module attributes {stable_mosaic.version = 11 : i64} {
  func.func @_proj_kernel(%arg0: i32, %arg1: memref<16x32xf32, #tpu.memory_space<vmem>>, %arg2: memref<32x16xf32, #tpu.memory_space<vmem>>, %arg3: memref<1x16xf32, #tpu.memory_space<vmem>>, %arg4: memref<16x32xf32, #tpu.memory_space<vmem>>, %arg5: memref<1x32xf32, #tpu.memory_space<vmem>>, %arg6: memref<16x32xf32, #tpu.memory_space<vmem>>) attributes {dimension_semantics = [#tpu.dimension_semantics<parallel>], iteration_bounds = array<i64: 1>, scalar_prefetch = 0 : i64, scratch_operands = 0 : i64, tpu.core_type = #tpu.core_type<tc>, window_params = [{transform_indices = @transform_0, window_bounds = array<i64: 16, 32>}, {pipeline_mode = #tpu.pipeline_mode<synchronous>, transform_indices = @transform_1, window_bounds = array<i64: 32, 16>}, {pipeline_mode = #tpu.pipeline_mode<synchronous>, transform_indices = @transform_2, window_bounds = array<i64: 1, 16>}, {pipeline_mode = #tpu.pipeline_mode<synchronous>, transform_indices = @transform_3, window_bounds = array<i64: 16, 32>}, {pipeline_mode = #tpu.pipeline_mode<synchronous>, transform_indices = @transform_4, window_bounds = array<i64: 1, 32>}, {transform_indices = @transform_5, window_bounds = array<i64: 16, 32>}]} {
    %c0 = arith.constant 0 : index
    %c0_0 = arith.constant 0 : index
    %0 = vector.load %arg1[%c0, %c0_0] : memref<16x32xf32, #tpu.memory_space<vmem>>, vector<16x32xf32>
    %c0_1 = arith.constant 0 : index
    %c0_2 = arith.constant 0 : index
    %1 = vector.load %arg2[%c0_1, %c0_2] : memref<32x16xf32, #tpu.memory_space<vmem>>, vector<32x16xf32>
    %cst = arith.constant dense<0.000000e+00> : vector<16x16xf32>
    %2 = tpu.matmul %0, %1, %cst {dimension_numbers = #tpu.dot_dimension_numbers<[1], [0], [0], [1], [0, 0, 1, 1], [], []>} : vector<16x32xf32>, vector<32x16xf32>, vector<16x16xf32> -> vector<16x16xf32>
    %c0_3 = arith.constant 0 : index
    %c0_4 = arith.constant 0 : index
    %3 = vector.load %arg3[%c0_3, %c0_4] : memref<1x16xf32, #tpu.memory_space<vmem>>, vector<1x16xf32>
    %4 = vector.broadcast %3 : vector<1x16xf32> to vector<16x16xf32>
    %5 = arith.addf %2, %4 : vector<16x16xf32>
    %c0_5 = arith.constant 0 : index
    %c0_6 = arith.constant 0 : index
    %6 = vector.load %arg4[%c0_5, %c0_6] : memref<16x32xf32, #tpu.memory_space<vmem>>, vector<16x32xf32>
    %cst_7 = arith.constant dense<0.000000e+00> : vector<16x32xf32>
    %7 = tpu.matmul %5, %6, %cst_7 {dimension_numbers = #tpu.dot_dimension_numbers<[1], [0], [0], [1], [0, 0, 1, 1], [], []>} : vector<16x16xf32>, vector<16x32xf32>, vector<16x32xf32> -> vector<16x32xf32>
    %c0_8 = arith.constant 0 : index
    %c0_9 = arith.constant 0 : index
    %8 = vector.load %arg5[%c0_8, %c0_9] : memref<1x32xf32, #tpu.memory_space<vmem>>, vector<1x32xf32>
    %9 = vector.broadcast %8 : vector<1x32xf32> to vector<16x32xf32>
    %10 = arith.addf %7, %9 : vector<16x32xf32>
    %c0_10 = arith.constant 0 : index
    %c0_11 = arith.constant 0 : index
    %11 = vector.load %arg6[%c0_10, %c0_11] : memref<16x32xf32, #tpu.memory_space<vmem>>, vector<16x32xf32>
    tpu.vector_store %arg6[%c0_10, %c0_11], %10 {strides = array<i32>} : memref<16x32xf32, #tpu.memory_space<vmem>>, vector<16x32xf32>,
    return
  }
  func.func @transform_0(%arg0: i32) -> (i32, i32) {
    %c0_i32 = arith.constant 0 : i32
    %c0_i32_0 = arith.constant 0 : i32
    return %arg0, %c0_i32 : i32, i32
  }
  func.func @transform_1(%arg0: i32) -> (i32, i32) {
    %c0_i32 = arith.constant 0 : i32
    %c0_i32_0 = arith.constant 0 : i32
    %c0_i32_1 = arith.constant 0 : i32
    return %c0_i32, %c0_i32_0 : i32, i32
  }
  func.func @transform_2(%arg0: i32) -> (i32, i32) {
    %c0_i32 = arith.constant 0 : i32
    %c0_i32_0 = arith.constant 0 : i32
    %c0_i32_1 = arith.constant 0 : i32
    return %c0_i32, %c0_i32_0 : i32, i32
  }
  func.func @transform_3(%arg0: i32) -> (i32, i32) {
    %c0_i32 = arith.constant 0 : i32
    %c0_i32_0 = arith.constant 0 : i32
    %c0_i32_1 = arith.constant 0 : i32
    return %c0_i32, %c0_i32_0 : i32, i32
  }
  func.func @transform_4(%arg0: i32) -> (i32, i32) {
    %c0_i32 = arith.constant 0 : i32
    %c0_i32_0 = arith.constant 0 : i32
    %c0_i32_1 = arith.constant 0 : i32
    return %c0_i32, %c0_i32_0 : i32, i32
  }
  func.func @transform_5(%arg0: i32) -> (i32, i32) {
    %c0_i32 = arith.constant 0 : i32
    %c0_i32_0 = arith.constant 0 : i32
    return %arg0, %c0_i32 : i32, i32
  }
}

module attributes {stable_mosaic.version = 11 : i64} {
  func.func @_recurrence_kernel(%arg0: i32, %arg1: memref<8x2x32xf32, #tpu.memory_space<vmem>>, %arg2: memref<2x32xf32, #tpu.memory_space<vmem>>, %arg3: memref<32x32xf32, #tpu.memory_space<vmem>>, %arg4: memref<1x2x256xf32, #tpu.memory_space<vmem>>, %arg5: memref<2x32xf32, #tpu.memory_space<vmem>>) attributes {dimension_semantics = [#tpu.dimension_semantics<arbitrary>], iteration_bounds = array<i64: 1>, scalar_prefetch = 0 : i64, scratch_operands = 1 : i64, tpu.core_type = #tpu.core_type<tc>, window_params = [{transform_indices = @transform_0, window_bounds = array<i64: 8, 2, 32>}, {pipeline_mode = #tpu.pipeline_mode<synchronous>, transform_indices = @transform_1, window_bounds = array<i64: 2, 32>}, {pipeline_mode = #tpu.pipeline_mode<synchronous>, transform_indices = @transform_2, window_bounds = array<i64: 32, 32>}, {transform_indices = @transform_3, window_bounds = array<i64: 1, 2, 256>}]} {
    %c0_i32 = arith.constant 0 : i32
    %0 = arith.cmpi eq, %arg0, %c0_i32 : i32
    %1 = arith.extui %0 : i1 to i32
    %c0_i32_0 = arith.constant 0 : i32
    %2 = arith.cmpi ne, %1, %c0_i32_0 : i32
    scf.if %2 {
      %c0_33 = arith.constant 0 : index
      %c0_34 = arith.constant 0 : index
      %50 = vector.load %arg2[%c0_33, %c0_34] : memref<2x32xf32, #tpu.memory_space<vmem>>, vector<2x32xf32>
      %c0_35 = arith.constant 0 : index
      %c0_36 = arith.constant 0 : index
      %51 = vector.load %arg5[%c0_35, %c0_36] : memref<2x32xf32, #tpu.memory_space<vmem>>, vector<2x32xf32>
      tpu.vector_store %arg5[%c0_35, %c0_36], %50 {strides = array<i32>} : memref<2x32xf32, #tpu.memory_space<vmem>>, vector<2x32xf32>,
    } else {
    }
    %c0 = arith.constant 0 : index
    %c0_1 = arith.constant 0 : index
    %3 = vector.load %arg3[%c0, %c0_1] : memref<32x32xf32, #tpu.memory_space<vmem>>, vector<32x32xf32>
    %c0_2 = arith.constant 0 : index
    %c0_3 = arith.constant 0 : index
    %4 = vector.load %arg5[%c0_2, %c0_3] : memref<2x32xf32, #tpu.memory_space<vmem>>, vector<2x32xf32>
    %c0_4 = arith.constant 0 : index
    %c0_5 = arith.constant 0 : index
    %c0_6 = arith.constant 0 : index
    %5 = vector.load %arg1[%c0_4, %c0_5, %c0_6] : memref<8x2x32xf32, #tpu.memory_space<vmem>>, vector<1x2x32xf32>
    %6 = vector.shape_cast %5 : vector<1x2x32xf32> to vector<2x32xf32>
    %cst = arith.constant dense<0.000000e+00> : vector<2x32xf32>
    %7 = tpu.matmul %4, %3, %cst {dimension_numbers = #tpu.dot_dimension_numbers<[1], [0], [0], [1], [0, 0, 1, 1], [], []>} : vector<2x32xf32>, vector<32x32xf32>, vector<2x32xf32> -> vector<2x32xf32>
    %8 = arith.addf %6, %7 : vector<2x32xf32>
    %9 = math.tanh %8 : vector<2x32xf32>
    %c1 = arith.constant 1 : index
    %c0_7 = arith.constant 0 : index
    %c0_8 = arith.constant 0 : index
    %10 = vector.load %arg1[%c1, %c0_7, %c0_8] : memref<8x2x32xf32, #tpu.memory_space<vmem>>, vector<1x2x32xf32>
    %11 = vector.shape_cast %10 : vector<1x2x32xf32> to vector<2x32xf32>
    %cst_9 = arith.constant dense<0.000000e+00> : vector<2x32xf32>
    %12 = tpu.matmul %9, %3, %cst_9 {dimension_numbers = #tpu.dot_dimension_numbers<[1], [0], [0], [1], [0, 0, 1, 1], [], []>} : vector<2x32xf32>, vector<32x32xf32>, vector<2x32xf32> -> vector<2x32xf32>
    %13 = arith.addf %11, %12 : vector<2x32xf32>
    %14 = math.tanh %13 : vector<2x32xf32>
    %c2 = arith.constant 2 : index
    %c0_10 = arith.constant 0 : index
    %c0_11 = arith.constant 0 : index
    %15 = vector.load %arg1[%c2, %c0_10, %c0_11] : memref<8x2x32xf32, #tpu.memory_space<vmem>>, vector<1x2x32xf32>
    %16 = vector.shape_cast %15 : vector<1x2x32xf32> to vector<2x32xf32>
    %cst_12 = arith.constant dense<0.000000e+00> : vector<2x32xf32>
    %17 = tpu.matmul %14, %3, %cst_12 {dimension_numbers = #tpu.dot_dimension_numbers<[1], [0], [0], [1], [0, 0, 1, 1], [], []>} : vector<2x32xf32>, vector<32x32xf32>, vector<2x32xf32> -> vector<2x32xf32>
    %18 = arith.addf %16, %17 : vector<2x32xf32>
    %19 = math.tanh %18 : vector<2x32xf32>
    %c3 = arith.constant 3 : index
    %c0_13 = arith.constant 0 : index
    %c0_14 = arith.constant 0 : index
    %20 = vector.load %arg1[%c3, %c0_13, %c0_14] : memref<8x2x32xf32, #tpu.memory_space<vmem>>, vector<1x2x32xf32>
    %21 = vector.shape_cast %20 : vector<1x2x32xf32> to vector<2x32xf32>
    %cst_15 = arith.constant dense<0.000000e+00> : vector<2x32xf32>
    %22 = tpu.matmul %19, %3, %cst_15 {dimension_numbers = #tpu.dot_dimension_numbers<[1], [0], [0], [1], [0, 0, 1, 1], [], []>} : vector<2x32xf32>, vector<32x32xf32>, vector<2x32xf32> -> vector<2x32xf32>
    %23 = arith.addf %21, %22 : vector<2x32xf32>
    %24 = math.tanh %23 : vector<2x32xf32>
    %c4 = arith.constant 4 : index
    %c0_16 = arith.constant 0 : index
    %c0_17 = arith.constant 0 : index
    %25 = vector.load %arg1[%c4, %c0_16, %c0_17] : memref<8x2x32xf32, #tpu.memory_space<vmem>>, vector<1x2x32xf32>
    %26 = vector.shape_cast %25 : vector<1x2x32xf32> to vector<2x32xf32>
    %cst_18 = arith.constant dense<0.000000e+00> : vector<2x32xf32>
    %27 = tpu.matmul %24, %3, %cst_18 {dimension_numbers = #tpu.dot_dimension_numbers<[1], [0], [0], [1], [0, 0, 1, 1], [], []>} : vector<2x32xf32>, vector<32x32xf32>, vector<2x32xf32> -> vector<2x32xf32>
    %28 = arith.addf %26, %27 : vector<2x32xf32>
    %29 = math.tanh %28 : vector<2x32xf32>
    %c5 = arith.constant 5 : index
    %c0_19 = arith.constant 0 : index
    %c0_20 = arith.constant 0 : index
    %30 = vector.load %arg1[%c5, %c0_19, %c0_20] : memref<8x2x32xf32, #tpu.memory_space<vmem>>, vector<1x2x32xf32>
    %31 = vector.shape_cast %30 : vector<1x2x32xf32> to vector<2x32xf32>
    %cst_21 = arith.constant dense<0.000000e+00> : vector<2x32xf32>
    %32 = tpu.matmul %29, %3, %cst_21 {dimension_numbers = #tpu.dot_dimension_numbers<[1], [0], [0], [1], [0, 0, 1, 1], [], []>} : vector<2x32xf32>, vector<32x32xf32>, vector<2x32xf32> -> vector<2x32xf32>
    %33 = arith.addf %31, %32 : vector<2x32xf32>
    %34 = math.tanh %33 : vector<2x32xf32>
    %c6 = arith.constant 6 : index
    %c0_22 = arith.constant 0 : index
    %c0_23 = arith.constant 0 : index
    %35 = vector.load %arg1[%c6, %c0_22, %c0_23] : memref<8x2x32xf32, #tpu.memory_space<vmem>>, vector<1x2x32xf32>
    %36 = vector.shape_cast %35 : vector<1x2x32xf32> to vector<2x32xf32>
    %cst_24 = arith.constant dense<0.000000e+00> : vector<2x32xf32>
    %37 = tpu.matmul %34, %3, %cst_24 {dimension_numbers = #tpu.dot_dimension_numbers<[1], [0], [0], [1], [0, 0, 1, 1], [], []>} : vector<2x32xf32>, vector<32x32xf32>, vector<2x32xf32> -> vector<2x32xf32>
    %38 = arith.addf %36, %37 : vector<2x32xf32>
    %39 = math.tanh %38 : vector<2x32xf32>
    %c7 = arith.constant 7 : index
    %c0_25 = arith.constant 0 : index
    %c0_26 = arith.constant 0 : index
    %40 = vector.load %arg1[%c7, %c0_25, %c0_26] : memref<8x2x32xf32, #tpu.memory_space<vmem>>, vector<1x2x32xf32>
    %41 = vector.shape_cast %40 : vector<1x2x32xf32> to vector<2x32xf32>
    %cst_27 = arith.constant dense<0.000000e+00> : vector<2x32xf32>
    %42 = tpu.matmul %39, %3, %cst_27 {dimension_numbers = #tpu.dot_dimension_numbers<[1], [0], [0], [1], [0, 0, 1, 1], [], []>} : vector<2x32xf32>, vector<32x32xf32>, vector<2x32xf32> -> vector<2x32xf32>
    %43 = arith.addf %41, %42 : vector<2x32xf32>
    %44 = math.tanh %43 : vector<2x32xf32>
    %c0_28 = arith.constant 0 : index
    %c0_29 = arith.constant 0 : index
    %45 = vector.load %arg5[%c0_28, %c0_29] : memref<2x32xf32, #tpu.memory_space<vmem>>, vector<2x32xf32>
    tpu.vector_store %arg5[%c0_28, %c0_29], %44 {strides = array<i32>} : memref<2x32xf32, #tpu.memory_space<vmem>>, vector<2x32xf32>,
    %46 = tpu.concatenate %9, %14, %19, %24, %29, %34, %39, %44 in 1 : vector<2x32xf32>, vector<2x32xf32>, vector<2x32xf32>, vector<2x32xf32>, vector<2x32xf32>, vector<2x32xf32>, vector<2x32xf32>, vector<2x32xf32> -> vector<2x256xf32>
    %c0_30 = arith.constant 0 : index
    %c0_31 = arith.constant 0 : index
    %c0_32 = arith.constant 0 : index
    %47 = vector.load %arg4[%c0_30, %c0_31, %c0_32] : memref<1x2x256xf32, #tpu.memory_space<vmem>>, vector<1x2x256xf32>
    %48 = vector.shape_cast %47 : vector<1x2x256xf32> to vector<2x256xf32>
    %49 = vector.shape_cast %46 : vector<2x256xf32> to vector<1x2x256xf32>
    tpu.vector_store %arg4[%c0_30, %c0_31, %c0_32], %49 {strides = array<i32>} : memref<1x2x256xf32, #tpu.memory_space<vmem>>, vector<1x2x256xf32>,
    return
  }
  func.func @transform_0(%arg0: i32) -> (i32, i32, i32) {
    %c0_i32 = arith.constant 0 : i32
    %c0_i32_0 = arith.constant 0 : i32
    %c0_i32_1 = arith.constant 0 : i32
    return %arg0, %c0_i32, %c0_i32_0 : i32, i32, i32
  }
  func.func @transform_1(%arg0: i32) -> (i32, i32) {
    %c0_i32 = arith.constant 0 : i32
    %c0_i32_0 = arith.constant 0 : i32
    %c0_i32_1 = arith.constant 0 : i32
    return %c0_i32, %c0_i32_0 : i32, i32
  }
  func.func @transform_2(%arg0: i32) -> (i32, i32) {
    %c0_i32 = arith.constant 0 : i32
    %c0_i32_0 = arith.constant 0 : i32
    %c0_i32_1 = arith.constant 0 : i32
    return %c0_i32, %c0_i32_0 : i32, i32
  }
  func.func @transform_3(%arg0: i32) -> (i32, i32, i32) {
    %c0_i32 = arith.constant 0 : i32
    %c0_i32_0 = arith.constant 0 : i32
    %c0_i32_1 = arith.constant 0 : i32
    return %arg0, %c0_i32, %c0_i32_0 : i32, i32, i32
  }
}

</mosaic_0001>

<llo_original>
// kernel: rnn_forward.2
$region0: #{rnn_forward.2}
  #allocation0 [shape = 'u32[]', space=smem, size = 0x4, offset = 0x4, fixed_abs, tag = 'smem constant byte address 0x4 - core index']
  #allocation1 [shape = 'u32[144,128]{1,0:T(1,128)}', space=vmem, size = 0x12000, scoped, tag = 'internal scratch']
  %s0 = inlined_call_operand.vmem [shape: f32[16,32], index: 0, kind: input, shape index: {}]
  %s1 = inlined_call_operand.vmem [shape: f32[32,16], index: 1, kind: input, shape index: {}]
  %s2 = inlined_call_operand.vmem [shape: f32[1,16], index: 2, kind: input, shape index: {}]
  %s3 = inlined_call_operand.vmem [shape: f32[16,32], index: 3, kind: input, shape index: {}]
  %s4 = inlined_call_operand.vmem [shape: f32[1,32], index: 4, kind: input, shape index: {}]
  %s5 = inlined_call_operand.vmem [shape: f32[16,32], index: 5, kind: output, shape index: {}]
  %s6 = sld [smem:[#allocation0]]
  $region30: #{rnn_forward.2} parent=0
    _
  %s8 = ssub.s32 1, %s6
  %s9 = scalar_select 0, %s8, %s6
  // Predicated region
  $region2: #{rnn_forward.2} parent=0 // pred_check
    _
  $region3: #{rnn_forward.2} parent=0 // pred_check_branch
    %11 = sbr.rel (0) target = $region5
  $region4: #{rnn_forward.2} parent=0 // pred_region
    _
  $region5: #{rnn_forward.2} parent=0 // pred_fallthru
    _
  // Predicated region
  $region6: #{rnn_forward.2} parent=0 // pred_check
    _
  $region7: #{rnn_forward.2} parent=0 // pred_check_branch
    %13 = sbr.rel (0) target = $region9
  $region8: #{rnn_forward.2} parent=0 // pred_region
    _
  $region9: #{rnn_forward.2} parent=0 // pred_fallthru
    _
  // Predicated region
  $region10: #{rnn_forward.2} parent=0 // pred_check
    _
  $region11: #{rnn_forward.2} parent=0 // pred_check_branch
    %15 = sbr.rel (0) target = $region13
  $region12: #{rnn_forward.2} parent=0 // pred_region
    _
  $region13: #{rnn_forward.2} parent=0 // pred_fallthru
    _
  // Predicated region
  $region14: #{rnn_forward.2} parent=0 // pred_check
    _
  $region15: #{rnn_forward.2} parent=0 // pred_check_branch
    %17 = sbr.rel (0) target = $region17
  $region16: #{rnn_forward.2} parent=0 // pred_region
    _
  $region17: #{rnn_forward.2} parent=0 // pred_fallthru
    _
  // Predicated region
  $region18: #{rnn_forward.2} parent=0 // pred_check
    _
  $region19: #{rnn_forward.2} parent=0 // pred_check_branch
    %19 = sbr.rel (0) target = $region21
  $region20: #{rnn_forward.2} parent=0 // pred_region
    _
  $region21: #{rnn_forward.2} parent=0 // pred_fallthru
    _
  %v20 = vld [vmem:[%s0] sm:$0xff]
  %v21 = vld [vmem:[%s0 + $0x8] sm:$0xff]
  %v22 = vld [vmem:[%s1] sm:$0xff]
  %v23 = vld [vmem:[%s1 + $0x8] sm:$0xff]
  %v24 = vld [vmem:[%s1 + $0x10] sm:$0xff]
  %v25 = vld [vmem:[%s1 + $0x18] sm:$0xff]
  %v26 = vld [vmem:[%s2] sm:$0x1]
  %v28 = vlaneseq
  %v29 = vshrl.u32 %v28, 7
  %v30 = vsub.s32 0, %v29
  %v31 = vrot.slane %v26, %v30
  %vm33 = vcmask 261120
  %v35 = vsel %vm33, %v20, 0
  %v38 = vsel %vm33, %v21, 0
  %40 = vmatprep.subr.mxu0 0.0
  %41 = vmatpush1.msra.mxu0 0.0
  %42 = vmatprep.subr.mxu0 0.0
  %43 = vmatpush1.msra.mxu0 0.0
  %44 = vmatprep.subr.mxu0 0.0
  %45 = vmatpush1.msra.mxu0 0.0
  %46 = vmatprep.subr.mxu0 0.0
  %47 = vmatpush1.msra.mxu0 0.0
  %48 = vmatprep.subr.mxu0 0.0
  %49 = vmatpush1.msra.mxu0 0.0
  %50 = vmatprep.subr.mxu0 0.0
  %51 = vmatpush1.msra.mxu0 0.0
  %52 = vmatprep.subr.mxu0 0.0
  %53 = vmatpush1.msra.mxu0 0.0
  %54 = vmatprep.subr.mxu0 0.0
  %55 = vmatpush1.msra.mxu0 0.0
  %56 = vmatprep.subr.mxu0 0.0
  %57 = vmatpush1.msra.mxu0 0.0
  %58 = vmatprep.subr.mxu0 0.0
  %59 = vmatpush1.msra.mxu0 0.0
  %60 = vmatprep.subr.mxu0 0.0
  %61 = vmatpush1.msra.mxu0 0.0
  %62 = vmatprep.subr.mxu0 0.0
  %63 = vmatpush1.msra.mxu0 0.0
  %64 = vmatprep.subr.mxu0 0.0
  %65 = vmatpush1.msra.mxu0 %v25
  %66 = vmatprep.subr.mxu0 0.0
  %67 = vmatpush1.msra.mxu0 %v24
  %68 = vmatprep.subr.mxu0 0.0
  %69 = vmatpush1.msra.mxu0 %v23
  %70 = vmatprep.subr.mxu0 0.0
  %71 = vmatpush1.msra.mxu0 %v22
  %72 = vmatprep.subr.mxu0 0.0
  %73 = vmatpush2.msra.mxu0 0.0
  %74 = vmatprep.subr.mxu0 0.0
  %75 = vmatpush2.msra.mxu0 0.0
  %76 = vmatprep.subr.mxu0 0.0
  %77 = vmatpush2.msra.mxu0 0.0
  %78 = vmatprep.subr.mxu0 0.0
  %79 = vmatpush2.msra.mxu0 0.0
  %80 = vmatprep.subr.mxu0 0.0
  %81 = vmatpush2.msra.mxu0 0.0
  %82 = vmatprep.subr.mxu0 0.0
  %83 = vmatpush2.msra.mxu0 0.0
  %84 = vmatprep.subr.mxu0 0.0
  %85 = vmatpush2.msra.mxu0 0.0
  %86 = vmatprep.subr.mxu0 0.0
  %87 = vmatpush2.msra.mxu0 0.0
  %88 = vmatprep.subr.mxu0 0.0
  %89 = vmatpush2.msra.mxu0 0.0
  %90 = vmatprep.subr.mxu0 0.0
  %91 = vmatpush2.msra.mxu0 0.0
  %92 = vmatprep.subr.mxu0 0.0
  %93 = vmatpush2.msra.mxu0 0.0
  %94 = vmatprep.subr.mxu0 0.0
  %95 = vmatpush2.msra.mxu0 0.0
  %96 = vmatprep.subr.mxu0 0.0
  %97 = vmatpush2.msra.mxu0 0.0
  %98 = vmatprep.subr.mxu0 0.0
  %99 = vmatpush2.msra.mxu0 0.0
  %100 = vmatprep.subr.mxu0 0.0
  %101 = vmatpush2.msra.mxu0 0.0
  %102 = vmatprep.subr.mxu0 0.0
  %103 = vmatpush2.msra.mxu0 0.0
  %104 = vmatprep.mubr.f32.mxu0 0.0
  %105 = vmatmul.mubr.f32.gmra.mxu0 %v35
  %v106 = vpop.f32.mrf.mxu0
  %v107 = vadd.f32 %v31, %v106
  %v108 = vpop.f32.mrf.mxu0
  %109 = vmatprep.mubr.f32.mxu0 0.0
  %110 = vmatmul.mubr.f32.gmra.mxu0 %v38
  %v111 = vpop.f32.mrf.mxu0
  %v112 = vadd.f32 %v31, %v111
  %v113 = vpop.f32.mrf.mxu0
  %114 = vdwg.mxu0
  %v115 = vld [vmem:[%s3] sm:$0xff]
  %v116 = vld [vmem:[%s3 + $0x8] sm:$0xff]
  %v117 = vld [vmem:[%s4] sm:$0x1]
  %v119 = vlaneseq
  %v120 = vshrl.u32 %v119, 7
  %v121 = vsub.s32 0, %v120
  %v122 = vrot.slane %v117, %v121
  %vm124 = vcmask 130048
  %v126 = vsel %vm124, %v107, 0
  %v129 = vsel %vm124, %v112, 0
  %131 = vmatprep.subr.mxu0 0.0
  %132 = vmatpush1.msra.mxu0 0.0
  %133 = vmatprep.subr.mxu0 0.0
  %134 = vmatpush1.msra.mxu0 0.0
  %135 = vmatprep.subr.mxu0 0.0
  %136 = vmatpush1.msra.mxu0 0.0
  %137 = vmatprep.subr.mxu0 0.0
  %138 = vmatpush1.msra.mxu0 0.0
  %139 = vmatprep.subr.mxu0 0.0
  %140 = vmatpush1.msra.mxu0 0.0
  %141 = vmatprep.subr.mxu0 0.0
  %142 = vmatpush1.msra.mxu0 0.0
  %143 = vmatprep.subr.mxu0 0.0
  %144 = vmatpush1.msra.mxu0 0.0
  %145 = vmatprep.subr.mxu0 0.0
  %146 = vmatpush1.msra.mxu0 0.0
  %147 = vmatprep.subr.mxu0 0.0
  %148 = vmatpush1.msra.mxu0 0.0
  %149 = vmatprep.subr.mxu0 0.0
  %150 = vmatpush1.msra.mxu0 0.0
  %151 = vmatprep.subr.mxu0 0.0
  %152 = vmatpush1.msra.mxu0 0.0
  %153 = vmatprep.subr.mxu0 0.0
  %154 = vmatpush1.msra.mxu0 0.0
  %155 = vmatprep.subr.mxu0 0.0
  %156 = vmatpush1.msra.mxu0 0.0
  %157 = vmatprep.subr.mxu0 0.0
  %158 = vmatpush1.msra.mxu0 0.0
  %159 = vmatprep.subr.mxu0 0.0
  %160 = vmatpush1.msra.mxu0 %v116
  %161 = vmatprep.subr.mxu0 0.0
  %162 = vmatpush1.msra.mxu0 %v115
  %163 = vmatprep.subr.mxu0 0.0
  %164 = vmatpush2.msra.mxu0 0.0
  %165 = vmatprep.subr.mxu0 0.0
  %166 = vmatpush2.msra.mxu0 0.0
  %167 = vmatprep.subr.mxu0 0.0
  %168 = vmatpush2.msra.mxu0 0.0
  %169 = vmatprep.subr.mxu0 0.0
  %170 = vmatpush2.msra.mxu0 0.0
  %171 = vmatprep.subr.mxu0 0.0
  %172 = vmatpush2.msra.mxu0 0.0
  %173 = vmatprep.subr.mxu0 0.0
  %174 = vmatpush2.msra.mxu0 0.0
  %175 = vmatprep.subr.mxu0 0.0
  %176 = vmatpush2.msra.mxu0 0.0
  %177 = vmatprep.subr.mxu0 0.0
  %178 = vmatpush2.msra.mxu0 0.0
  %179 = vmatprep.subr.mxu0 0.0
  %180 = vmatpush2.msra.mxu0 0.0
  %181 = vmatprep.subr.mxu0 0.0
  %182 = vmatpush2.msra.mxu0 0.0
  %183 = vmatprep.subr.mxu0 0.0
  %184 = vmatpush2.msra.mxu0 0.0
  %185 = vmatprep.subr.mxu0 0.0
  %186 = vmatpush2.msra.mxu0 0.0
  %187 = vmatprep.subr.mxu0 0.0
  %188 = vmatpush2.msra.mxu0 0.0
  %189 = vmatprep.subr.mxu0 0.0
  %190 = vmatpush2.msra.mxu0 0.0
  %191 = vmatprep.subr.mxu0 0.0
  %192 = vmatpush2.msra.mxu0 0.0
  %193 = vmatprep.subr.mxu0 0.0
  %194 = vmatpush2.msra.mxu0 0.0
  %195 = vmatprep.mubr.f32.mxu0 0.0
  %196 = vmatmul.mubr.f32.gmra.mxu0 %v126
  %v197 = vpop.f32.mrf.mxu0
  %v198 = vadd.f32 %v122, %v197
  %v199 = vpop.f32.mrf.mxu0
  %200 = vmatprep.mubr.f32.mxu0 0.0
  %201 = vmatmul.mubr.f32.gmra.mxu0 %v129
  %v202 = vpop.f32.mrf.mxu0
  %v203 = vadd.f32 %v122, %v202
  %v204 = vpop.f32.mrf.mxu0
  %205 = vdwg.mxu0
  %206 = vst.msk [vmem:[%s5] sm:$0xff] %vm33, %v198
  %207 = vst.msk [vmem:[%s5 + $0x8] sm:$0xff] %vm33, %v203
  // Predicated region
  $region22: #{rnn_forward.2} parent=0 // pred_check
    _
  $region23: #{rnn_forward.2} parent=0 // pred_check_branch
    %209 = sbr.rel (0) target = $region25
  $region24: #{rnn_forward.2} parent=0 // pred_region
    _
  $region25: #{rnn_forward.2} parent=0 // pred_fallthru
    _
  // Predicated region
  $region26: #{rnn_forward.2} parent=0 // pred_check
    _
  $region27: #{rnn_forward.2} parent=0 // pred_check_branch
    %211 = sbr.rel (0) target = $region29
  $region28: #{rnn_forward.2} parent=0 // pred_region
    _
  $region29: #{rnn_forward.2} parent=0 // pred_fallthru
    _

// kernel: rnn_forward.3
$region0: #{rnn_forward.3}
  #allocation0 [shape = 'u32[]', space=smem, size = 0x4, offset = 0x4, fixed_abs, tag = 'smem constant byte address 0x4 - core index']
  #allocation1 [shape = 'u32[144,128]{1,0:T(1,128)}', space=vmem, size = 0x12000, scoped, tag = 'internal scratch']
  #allocation2 [shape = 'f32[2,32]{1,0:T(2,128)}', space=vmem, size = 0x400, scoped, tag = 'scratch operand']
  %s0 = inlined_call_operand.vmem [shape: f32[8,2,32], index: 0, kind: input, shape index: {}]
  %s1 = inlined_call_operand.vmem [shape: f32[2,32], index: 1, kind: input, shape index: {}]
  %s2 = inlined_call_operand.vmem [shape: f32[32,32], index: 2, kind: input, shape index: {}]
  %s3 = inlined_call_operand.vmem [shape: f32[1,2,256], index: 3, kind: output, shape index: {}]
  %s4 = sld [smem:[#allocation0]]
  $region26: #{rnn_forward.3} parent=0
    _
  %s6 = ssub.s32 1, %s4
  %s7 = scalar_select 0, %s6, %s4
  // Predicated region
  $region2: #{rnn_forward.3} parent=0 // pred_check
    _
  $region3: #{rnn_forward.3} parent=0 // pred_check_branch
    %9 = sbr.rel (0) target = $region5
  $region4: #{rnn_forward.3} parent=0 // pred_region
    _
  $region5: #{rnn_forward.3} parent=0 // pred_fallthru
    _
  // Predicated region
  $region6: #{rnn_forward.3} parent=0 // pred_check
    _
  $region7: #{rnn_forward.3} parent=0 // pred_check_branch
    %11 = sbr.rel (0) target = $region9
  $region8: #{rnn_forward.3} parent=0 // pred_region
    _
  $region9: #{rnn_forward.3} parent=0 // pred_fallthru
    _
  // Predicated region
  $region10: #{rnn_forward.3} parent=0 // pred_check
    _
  $region11: #{rnn_forward.3} parent=0 // pred_check_branch
    %13 = sbr.rel (0) target = $region13
  $region12: #{rnn_forward.3} parent=0 // pred_region
    _
  $region13: #{rnn_forward.3} parent=0 // pred_fallthru
    _
  %p14 = scmp.eq.s32.totalorder 0, 0
  // Predicated region
  $region14: #{rnn_forward.3} parent=0 // pred_check
    %p15 = pneg %p14
  $region15: #{rnn_forward.3} parent=0 // pred_check_branch
    %17 = sbr.rel (%p15) target = $region17
  $region16: #{rnn_forward.3} parent=0 // pred_region
    %v18 = vld [vmem:[%s1] sm:$0x3]
    %vm19 = vcmask 254976
    %20 = vst.msk [vmem:[#allocation2] sm:$0x3] %vm19, %v18
  $region17: #{rnn_forward.3} parent=0 // pred_fallthru
    _
  %v21 = vld [vmem:[%s2] sm:$0xff]
  %v22 = vld [vmem:[%s2 + $0x8] sm:$0xff]
  %v23 = vld [vmem:[%s2 + $0x10] sm:$0xff]
  %v24 = vld [vmem:[%s2 + $0x18] sm:$0xff]
  %v25 = vld [vmem:[#allocation2] sm:$0x3]
  %v26 = vld [vmem:[%s0] sm:$0x3]
  %vm27 = vcmask 261120
  %v29 = vsel %vm27, %v25, 0
  %31 = vmatprep.subr.mxu0 0.0
  %32 = vmatpush1.msra.mxu0 0.0
  %33 = vmatprep.subr.mxu0 0.0
  %34 = vmatpush1.msra.mxu0 0.0
  %35 = vmatprep.subr.mxu0 0.0
  %36 = vmatpush1.msra.mxu0 0.0
  %37 = vmatprep.subr.mxu0 0.0
  %38 = vmatpush1.msra.mxu0 0.0
  %39 = vmatprep.subr.mxu0 0.0
  %40 = vmatpush1.msra.mxu0 0.0
  %41 = vmatprep.subr.mxu0 0.0
  %42 = vmatpush1.msra.mxu0 0.0
  %43 = vmatprep.subr.mxu0 0.0
  %44 = vmatpush1.msra.mxu0 0.0
  %45 = vmatprep.subr.mxu0 0.0
  %46 = vmatpush1.msra.mxu0 0.0
  %47 = vmatprep.subr.mxu0 0.0
  %48 = vmatpush1.msra.mxu0 0.0
  %49 = vmatprep.subr.mxu0 0.0
  %50 = vmatpush1.msra.mxu0 0.0
  %51 = vmatprep.subr.mxu0 0.0
  %52 = vmatpush1.msra.mxu0 0.0
  %53 = vmatprep.subr.mxu0 0.0
  %54 = vmatpush1.msra.mxu0 0.0
  %55 = vmatprep.subr.mxu0 0.0
  %56 = vmatpush1.msra.mxu0 %v24
  %57 = vmatprep.subr.mxu0 0.0
  %58 = vmatpush1.msra.mxu0 %v23
  %59 = vmatprep.subr.mxu0 0.0
  %60 = vmatpush1.msra.mxu0 %v22
  %61 = vmatprep.subr.mxu0 0.0
  %62 = vmatpush1.msra.mxu0 %v21
  %63 = vmatprep.subr.mxu0 0.0
  %64 = vmatpush2.msra.mxu0 0.0
  %65 = vmatprep.subr.mxu0 0.0
  %66 = vmatpush2.msra.mxu0 0.0
  %67 = vmatprep.subr.mxu0 0.0
  %68 = vmatpush2.msra.mxu0 0.0
  %69 = vmatprep.subr.mxu0 0.0
  %70 = vmatpush2.msra.mxu0 0.0
  %71 = vmatprep.subr.mxu0 0.0
  %72 = vmatpush2.msra.mxu0 0.0
  %73 = vmatprep.subr.mxu0 0.0
  %74 = vmatpush2.msra.mxu0 0.0
  %75 = vmatprep.subr.mxu0 0.0
  %76 = vmatpush2.msra.mxu0 0.0
  %77 = vmatprep.subr.mxu0 0.0
  %78 = vmatpush2.msra.mxu0 0.0
  %79 = vmatprep.subr.mxu0 0.0
  %80 = vmatpush2.msra.mxu0 0.0
  %81 = vmatprep.subr.mxu0 0.0
  %82 = vmatpush2.msra.mxu0 0.0
  %83 = vmatprep.subr.mxu0 0.0
  %84 = vmatpush2.msra.mxu0 0.0
  %85 = vmatprep.subr.mxu0 0.0
  %86 = vmatpush2.msra.mxu0 0.0
  %87 = vmatprep.subr.mxu0 0.0
  %88 = vmatpush2.msra.mxu0 0.0
  %89 = vmatprep.subr.mxu0 0.0
  %90 = vmatpush2.msra.mxu0 0.0
  %91 = vmatprep.subr.mxu0 0.0
  %92 = vmatpush2.msra.mxu0 0.0
  %93 = vmatprep.subr.mxu0 0.0
  %94 = vmatpush2.msra.mxu0 0.0
  %95 = vmatprep.mubr.f32.mxu0 0.0
  %96 = vmatmul.mubr.f32.gmra.mxu0 %v29
  %v97 = vpop.f32.mrf.mxu0
  %v98 = vadd.f32 0.0, %v97
  %v99 = vpop.f32.mrf.mxu0
  %100 = vdwg.mxu0
  %v101 = vadd.f32 %v26, %v98
  %v102 = vtanh.pop %v101
  %s103 = scalar_lea.vmem %s0, 2
  %v104 = vld [vmem:[%s103] sm:$0x3]
  %v106 = vsel %vm27, %v102, 0
  %108 = vmatprep.subr.mxu0 0.0
  %109 = vmatpush1.msra.mxu0 0.0
  %110 = vmatprep.subr.mxu0 0.0
  %111 = vmatpush1.msra.mxu0 0.0
  %112 = vmatprep.subr.mxu0 0.0
  %113 = vmatpush1.msra.mxu0 0.0
  %114 = vmatprep.subr.mxu0 0.0
  %115 = vmatpush1.msra.mxu0 0.0
  %116 = vmatprep.subr.mxu0 0.0
  %117 = vmatpush1.msra.mxu0 0.0
  %118 = vmatprep.subr.mxu0 0.0
  %119 = vmatpush1.msra.mxu0 0.0
  %120 = vmatprep.subr.mxu0 0.0
  %121 = vmatpush1.msra.mxu0 0.0
  %122 = vmatprep.subr.mxu0 0.0
  %123 = vmatpush1.msra.mxu0 0.0
  %124 = vmatprep.subr.mxu0 0.0
  %125 = vmatpush1.msra.mxu0 0.0
  %126 = vmatprep.subr.mxu0 0.0
  %127 = vmatpush1.msra.mxu0 0.0
  %128 = vmatprep.subr.mxu0 0.0
  %129 = vmatpush1.msra.mxu0 0.0
  %130 = vmatprep.subr.mxu0 0.0
  %131 = vmatpush1.msra.mxu0 0.0
  %132 = vmatprep.subr.mxu0 0.0
  %133 = vmatpush1.msra.mxu0 %v24
  %134 = vmatprep.subr.mxu0 0.0
  %135 = vmatpush1.msra.mxu0 %v23
  %136 = vmatprep.subr.mxu0 0.0
  %137 = vmatpush1.msra.mxu0 %v22
  %138 = vmatprep.subr.mxu0 0.0
  %139 = vmatpush1.msra.mxu0 %v21
  %140 = vmatprep.subr.mxu0 0.0
  %141 = vmatpush2.msra.mxu0 0.0
  %142 = vmatprep.subr.mxu0 0.0
  %143 = vmatpush2.msra.mxu0 0.0
  %144 = vmatprep.subr.mxu0 0.0
  %145 = vmatpush2.msra.mxu0 0.0
  %146 = vmatprep.subr.mxu0 0.0
  %147 = vmatpush2.msra.mxu0 0.0
  %148 = vmatprep.subr.mxu0 0.0
  %149 = vmatpush2.msra.mxu0 0.0
  %150 = vmatprep.subr.mxu0 0.0
  %151 = vmatpush2.msra.mxu0 0.0
  %152 = vmatprep.subr.mxu0 0.0
  %153 = vmatpush2.msra.mxu0 0.0
  %154 = vmatprep.subr.mxu0 0.0
  %155 = vmatpush2.msra.mxu0 0.0
  %156 = vmatprep.subr.mxu0 0.0
  %157 = vmatpush2.msra.mxu0 0.0
  %158 = vmatprep.subr.mxu0 0.0
  %159 = vmatpush2.msra.mxu0 0.0
  %160 = vmatprep.subr.mxu0 0.0
  %161 = vmatpush2.msra.mxu0 0.0
  %162 = vmatprep.subr.mxu0 0.0
  %163 = vmatpush2.msra.mxu0 0.0
  %164 = vmatprep.subr.mxu0 0.0
  %165 = vmatpush2.msra.mxu0 0.0
  %166 = vmatprep.subr.mxu0 0.0
  %167 = vmatpush2.msra.mxu0 0.0
  %168 = vmatprep.subr.mxu0 0.0
  %169 = vmatpush2.msra.mxu0 0.0
  %170 = vmatprep.subr.mxu0 0.0
  %171 = vmatpush2.msra.mxu0 0.0
  %172 = vmatprep.mubr.f32.mxu0 0.0
  %173 = vmatmul.mubr.f32.gmra.mxu0 %v106
  %v174 = vpop.f32.mrf.mxu0
  %v175 = vadd.f32 0.0, %v174
  %v176 = vpop.f32.mrf.mxu0
  %177 = vdwg.mxu0
  %v178 = vadd.f32 %v104, %v175
  %v179 = vtanh.pop %v178
  %s180 = scalar_lea.vmem %s0, 4
  %v181 = vld [vmem:[%s180] sm:$0x3]
  %v183 = vsel %vm27, %v179, 0
  %185 = vmatprep.subr.mxu0 0.0
  %186 = vmatpush1.msra.mxu0 0.0
  %187 = vmatprep.subr.mxu0 0.0
  %188 = vmatpush1.msra.mxu0 0.0
  %189 = vmatprep.subr.mxu0 0.0
  %190 = vmatpush1.msra.mxu0 0.0
  %191 = vmatprep.subr.mxu0 0.0
  %192 = vmatpush1.msra.mxu0 0.0
  %193 = vmatprep.subr.mxu0 0.0
  %194 = vmatpush1.msra.mxu0 0.0
  %195 = vmatprep.subr.mxu0 0.0
  %196 = vmatpush1.msra.mxu0 0.0
  %197 = vmatprep.subr.mxu0 0.0
  %198 = vmatpush1.msra.mxu0 0.0
  %199 = vmatprep.subr.mxu0 0.0
  %200 = vmatpush1.msra.mxu0 0.0
  %201 = vmatprep.subr.mxu0 0.0
  %202 = vmatpush1.msra.mxu0 0.0
  %203 = vmatprep.subr.mxu0 0.0
  %204 = vmatpush1.msra.mxu0 0.0
  %205 = vmatprep.subr.mxu0 0.0
  %206 = vmatpush1.msra.mxu0 0.0
  %207 = vmatprep.subr.mxu0 0.0
  %208 = vmatpush1.msra.mxu0 0.0
  %209 = vmatprep.subr.mxu0 0.0
  %210 = vmatpush1.msra.mxu0 %v24
  %211 = vmatprep.subr.mxu0 0.0
  %212 = vmatpush1.msra.mxu0 %v23
  %213 = vmatprep.subr.mxu0 0.0
  %214 = vmatpush1.msra.mxu0 %v22
  %215 = vmatprep.subr.mxu0 0.0
  %216 = vmatpush1.msra.mxu0 %v21
  %217 = vmatprep.subr.mxu0 0.0
  %218 = vmatpush2.msra.mxu0 0.0
  %219 = vmatprep.subr.mxu0 0.0
  %220 = vmatpush2.msra.mxu0 0.0
  %221 = vmatprep.subr.mxu0 0.0
  %222 = vmatpush2.msra.mxu0 0.0
  %223 = vmatprep.subr.mxu0 0.0
  %224 = vmatpush2.msra.mxu0 0.0
  %225 = vmatprep.subr.mxu0 0.0
  %226 = vmatpush2.msra.mxu0 0.0
  %227 = vmatprep.subr.mxu0 0.0
  %228 = vmatpush2.msra.mxu0 0.0
  %229 = vmatprep.subr.mxu0 0.0
  %230 = vmatpush2.msra.mxu0 0.0
  %231 = vmatprep.subr.mxu0 0.0
  %232 = vmatpush2.msra.mxu0 0.0
  %233 = vmatprep.subr.mxu0 0.0
  %234 = vmatpush2.msra.mxu0 0.0
  %235 = vmatprep.subr.mxu0 0.0
  %236 = vmatpush2.msra.mxu0 0.0
  %237 = vmatprep.subr.mxu0 0.0
  %238 = vmatpush2.msra.mxu0 0.0
  %239 = vmatprep.subr.mxu0 0.0
  %240 = vmatpush2.msra.mxu0 0.0
  %241 = vmatprep.subr.mxu0 0.0
  %242 = vmatpush2.msra.mxu0 0.0
  %243 = vmatprep.subr.mxu0 0.0
  %244 = vmatpush2.msra.mxu0 0.0
  %245 = vmatprep.subr.mxu0 0.0
  %246 = vmatpush2.msra.mxu0 0.0
  %247 = vmatprep.subr.mxu0 0.0
  %248 = vmatpush2.msra.mxu0 0.0
  %249 = vmatprep.mubr.f32.mxu0 0.0
  %250 = vmatmul.mubr.f32.gmra.mxu0 %v183
  %v251 = vpop.f32.mrf.mxu0
  %v252 = vadd.f32 0.0, %v251
  %v253 = vpop.f32.mrf.mxu0
  %254 = vdwg.mxu0
  %v255 = vadd.f32 %v181, %v252
  %v256 = vtanh.pop %v255
  %s257 = scalar_lea.vmem %s0, 6
  %v258 = vld [vmem:[%s257] sm:$0x3]
  %v260 = vsel %vm27, %v256, 0
  %262 = vmatprep.subr.mxu0 0.0
  %263 = vmatpush1.msra.mxu0 0.0
  %264 = vmatprep.subr.mxu0 0.0
  %265 = vmatpush1.msra.mxu0 0.0
  %266 = vmatprep.subr.mxu0 0.0
  %267 = vmatpush1.msra.mxu0 0.0
  %268 = vmatprep.subr.mxu0 0.0
  %269 = vmatpush1.msra.mxu0 0.0
  %270 = vmatprep.subr.mxu0 0.0
  %271 = vmatpush1.msra.mxu0 0.0
  %272 = vmatprep.subr.mxu0 0.0
  %273 = vmatpush1.msra.mxu0 0.0
  %274 = vmatprep.subr.mxu0 0.0
  %275 = vmatpush1.msra.mxu0 0.0
  %276 = vmatprep.subr.mxu0 0.0
  %277 = vmatpush1.msra.mxu0 0.0
  %278 = vmatprep.subr.mxu0 0.0
  %279 = vmatpush1.msra.mxu0 0.0
  %280 = vmatprep.subr.mxu0 0.0
  %281 = vmatpush1.msra.mxu0 0.0
  %282 = vmatprep.subr.mxu0 0.0
  %283 = vmatpush1.msra.mxu0 0.0
  %284 = vmatprep.subr.mxu0 0.0
  %285 = vmatpush1.msra.mxu0 0.0
  %286 = vmatprep.subr.mxu0 0.0
  %287 = vmatpush1.msra.mxu0 %v24
  %288 = vmatprep.subr.mxu0 0.0
  %289 = vmatpush1.msra.mxu0 %v23
  %290 = vmatprep.subr.mxu0 0.0
  %291 = vmatpush1.msra.mxu0 %v22
  %292 = vmatprep.subr.mxu0 0.0
  %293 = vmatpush1.msra.mxu0 %v21
  %294 = vmatprep.subr.mxu0 0.0
  %295 = vmatpush2.msra.mxu0 0.0
  %296 = vmatprep.subr.mxu0 0.0
  %297 = vmatpush2.msra.mxu0 0.0
  %298 = vmatprep.subr.mxu0 0.0
  %299 = vmatpush2.msra.mxu0 0.0
  %300 = vmatprep.subr.mxu0 0.0
  %301 = vmatpush2.msra.mxu0 0.0
  %302 = vmatprep.subr.mxu0 0.0
  %303 = vmatpush2.msra.mxu0 0.0
  %304 = vmatprep.subr.mxu0 0.0
  %305 = vmatpush2.msra.mxu0 0.0
  %306 = vmatprep.subr.mxu0 0.0
  %307 = vmatpush2.msra.mxu0 0.0
  %308 = vmatprep.subr.mxu0 0.0
  %309 = vmatpush2.msra.mxu0 0.0
  %310 = vmatprep.subr.mxu0 0.0
  %311 = vmatpush2.msra.mxu0 0.0
  %312 = vmatprep.subr.mxu0 0.0
  %313 = vmatpush2.msra.mxu0 0.0
  %314 = vmatprep.subr.mxu0 0.0
  %315 = vmatpush2.msra.mxu0 0.0
  %316 = vmatprep.subr.mxu0 0.0
  %317 = vmatpush2.msra.mxu0 0.0
  %318 = vmatprep.subr.mxu0 0.0
  %319 = vmatpush2.msra.mxu0 0.0
  %320 = vmatprep.subr.mxu0 0.0
  %321 = vmatpush2.msra.mxu0 0.0
  %322 = vmatprep.subr.mxu0 0.0
  %323 = vmatpush2.msra.mxu0 0.0
  %324 = vmatprep.subr.mxu0 0.0
  %325 = vmatpush2.msra.mxu0 0.0
  %326 = vmatprep.mubr.f32.mxu0 0.0
  %327 = vmatmul.mubr.f32.gmra.mxu0 %v260
  %v328 = vpop.f32.mrf.mxu0
  %v329 = vadd.f32 0.0, %v328
  %v330 = vpop.f32.mrf.mxu0
  %331 = vdwg.mxu0
  %v332 = vadd.f32 %v258, %v329
  %v333 = vtanh.pop %v332
  %s334 = scalar_lea.vmem %s0, 8
  %v335 = vld [vmem:[%s334] sm:$0x3]
  %v337 = vsel %vm27, %v333, 0
  %339 = vmatprep.subr.mxu0 0.0
  %340 = vmatpush1.msra.mxu0 0.0
  %341 = vmatprep.subr.mxu0 0.0
  %342 = vmatpush1.msra.mxu0 0.0
  %343 = vmatprep.subr.mxu0 0.0
  %344 = vmatpush1.msra.mxu0 0.0
  %345 = vmatprep.subr.mxu0 0.0
  %346 = vmatpush1.msra.mxu0 0.0
  %347 = vmatprep.subr.mxu0 0.0
  %348 = vmatpush1.msra.mxu0 0.0
  %349 = vmatprep.subr.mxu0 0.0
  %350 = vmatpush1.msra.mxu0 0.0
  %351 = vmatprep.subr.mxu0 0.0
  %352 = vmatpush1.msra.mxu0 0.0
  %353 = vmatprep.subr.mxu0 0.0
  %354 = vmatpush1.msra.mxu0 0.0
  %355 = vmatprep.subr.mxu0 0.0
  %356 = vmatpush1.msra.mxu0 0.0
  %357 = vmatprep.subr.mxu0 0.0
  %358 = vmatpush1.msra.mxu0 0.0
  %359 = vmatprep.subr.mxu0 0.0
  %360 = vmatpush1.msra.mxu0 0.0
  %361 = vmatprep.subr.mxu0 0.0
  %362 = vmatpush1.msra.mxu0 0.0
  %363 = vmatprep.subr.mxu0 0.0
  %364 = vmatpush1.msra.mxu0 %v24
  %365 = vmatprep.subr.mxu0 0.0
  %366 = vmatpush1.msra.mxu0 %v23
  %367 = vmatprep.subr.mxu0 0.0
  %368 = vmatpush1.msra.mxu0 %v22
  %369 = vmatprep.subr.mxu0 0.0
  %370 = vmatpush1.msra.mxu0 %v21
  %371 = vmatprep.subr.mxu0 0.0
  %372 = vmatpush2.msra.mxu0 0.0
  %373 = vmatprep.subr.mxu0 0.0
  %374 = vmatpush2.msra.mxu0 0.0
  %375 = vmatprep.subr.mxu0 0.0
  %376 = vmatpush2.msra.mxu0 0.0
  %377 = vmatprep.subr.mxu0 0.0
  %378 = vmatpush2.msra.mxu0 0.0
  %379 = vmatprep.subr.mxu0 0.0
  %380 = vmatpush2.msra.mxu0 0.0
  %381 = vmatprep.subr.mxu0 0.0
  %382 = vmatpush2.msra.mxu0 0.0
  %383 = vmatprep.subr.mxu0 0.0
  %384 = vmatpush2.msra.mxu0 0.0
  %385 = vmatprep.subr.mxu0 0.0
  %386 = vmatpush2.msra.mxu0 0.0
  %387 = vmatprep.subr.mxu0 0.0
  %388 = vmatpush2.msra.mxu0 0.0
  %389 = vmatprep.subr.mxu0 0.0
  %390 = vmatpush2.msra.mxu0 0.0
  %391 = vmatprep.subr.mxu0 0.0
  %392 = vmatpush2.msra.mxu0 0.0
  %393 = vmatprep.subr.mxu0 0.0
  %394 = vmatpush2.msra.mxu0 0.0
  %395 = vmatprep.subr.mxu0 0.0
  %396 = vmatpush2.msra.mxu0 0.0
  %397 = vmatprep.subr.mxu0 0.0
  %398 = vmatpush2.msra.mxu0 0.0
  %399 = vmatprep.subr.mxu0 0.0
  %400 = vmatpush2.msra.mxu0 0.0
  %401 = vmatprep.subr.mxu0 0.0
  %402 = vmatpush2.msra.mxu0 0.0
  %403 = vmatprep.mubr.f32.mxu0 0.0
  %404 = vmatmul.mubr.f32.gmra.mxu0 %v337
  %v405 = vpop.f32.mrf.mxu0
  %v406 = vadd.f32 0.0, %v405
  %v407 = vpop.f32.mrf.mxu0
  %408 = vdwg.mxu0
  %v409 = vadd.f32 %v335, %v406
  %v410 = vtanh.pop %v409
  %s411 = scalar_lea.vmem %s0, 10
  %v412 = vld [vmem:[%s411] sm:$0x3]
  %v414 = vsel %vm27, %v410, 0
  %416 = vmatprep.subr.mxu0 0.0
  %417 = vmatpush1.msra.mxu0 0.0
  %418 = vmatprep.subr.mxu0 0.0
  %419 = vmatpush1.msra.mxu0 0.0
  %420 = vmatprep.subr.mxu0 0.0
  %421 = vmatpush1.msra.mxu0 0.0
  %422 = vmatprep.subr.mxu0 0.0
  %423 = vmatpush1.msra.mxu0 0.0
  %424 = vmatprep.subr.mxu0 0.0
  %425 = vmatpush1.msra.mxu0 0.0
  %426 = vmatprep.subr.mxu0 0.0
  %427 = vmatpush1.msra.mxu0 0.0
  %428 = vmatprep.subr.mxu0 0.0
  %429 = vmatpush1.msra.mxu0 0.0
  %430 = vmatprep.subr.mxu0 0.0
  %431 = vmatpush1.msra.mxu0 0.0
  %432 = vmatprep.subr.mxu0 0.0
  %433 = vmatpush1.msra.mxu0 0.0
  %434 = vmatprep.subr.mxu0 0.0
  %435 = vmatpush1.msra.mxu0 0.0
  %436 = vmatprep.subr.mxu0 0.0
  %437 = vmatpush1.msra.mxu0 0.0
  %438 = vmatprep.subr.mxu0 0.0
  %439 = vmatpush1.msra.mxu0 0.0
  %440 = vmatprep.subr.mxu0 0.0
  %441 = vmatpush1.msra.mxu0 %v24
  %442 = vmatprep.subr.mxu0 0.0
  %443 = vmatpush1.msra.mxu0 %v23
  %444 = vmatprep.subr.mxu0 0.0
  %445 = vmatpush1.msra.mxu0 %v22
  %446 = vmatprep.subr.mxu0 0.0
  %447 = vmatpush1.msra.mxu0 %v21
  %448 = vmatprep.subr.mxu0 0.0
  %449 = vmatpush2.msra.mxu0 0.0
  %450 = vmatprep.subr.mxu0 0.0
  %451 = vmatpush2.msra.mxu0 0.0
  %452 = vmatprep.subr.mxu0 0.0
  %453 = vmatpush2.msra.mxu0 0.0
  %454 = vmatprep.subr.mxu0 0.0
  %455 = vmatpush2.msra.mxu0 0.0
  %456 = vmatprep.subr.mxu0 0.0
  %457 = vmatpush2.msra.mxu0 0.0
  %458 = vmatprep.subr.mxu0 0.0
  %459 = vmatpush2.msra.mxu0 0.0
  %460 = vmatprep.subr.mxu0 0.0
  %461 = vmatpush2.msra.mxu0 0.0
  %462 = vmatprep.subr.mxu0 0.0
  %463 = vmatpush2.msra.mxu0 0.0
  %464 = vmatprep.subr.mxu0 0.0
  %465 = vmatpush2.msra.mxu0 0.0
  %466 = vmatprep.subr.mxu0 0.0
  %467 = vmatpush2.msra.mxu0 0.0
  %468 = vmatprep.subr.mxu0 0.0
  %469 = vmatpush2.msra.mxu0 0.0
  %470 = vmatprep.subr.mxu0 0.0
  %471 = vmatpush2.msra.mxu0 0.0
  %472 = vmatprep.subr.mxu0 0.0
  %473 = vmatpush2.msra.mxu0 0.0
  %474 = vmatprep.subr.mxu0 0.0
  %475 = vmatpush2.msra.mxu0 0.0
  %476 = vmatprep.subr.mxu0 0.0
  %477 = vmatpush2.msra.mxu0 0.0
  %478 = vmatprep.subr.mxu0 0.0
  %479 = vmatpush2.msra.mxu0 0.0
  %480 = vmatprep.mubr.f32.mxu0 0.0
  %481 = vmatmul.mubr.f32.gmra.mxu0 %v414
  %v482 = vpop.f32.mrf.mxu0
  %v483 = vadd.f32 0.0, %v482
  %v484 = vpop.f32.mrf.mxu0
  %485 = vdwg.mxu0
  %v486 = vadd.f32 %v412, %v483
  %v487 = vtanh.pop %v486
  %s488 = scalar_lea.vmem %s0, 12
  %v489 = vld [vmem:[%s488] sm:$0x3]
  %v491 = vsel %vm27, %v487, 0
  %493 = vmatprep.subr.mxu0 0.0
  %494 = vmatpush1.msra.mxu0 0.0
  %495 = vmatprep.subr.mxu0 0.0
  %496 = vmatpush1.msra.mxu0 0.0
  %497 = vmatprep.subr.mxu0 0.0
  %498 = vmatpush1.msra.mxu0 0.0
  %499 = vmatprep.subr.mxu0 0.0
  %500 = vmatpush1.msra.mxu0 0.0
  %501 = vmatprep.subr.mxu0 0.0
  %502 = vmatpush1.msra.mxu0 0.0
  %503 = vmatprep.subr.mxu0 0.0
  %504 = vmatpush1.msra.mxu0 0.0
  %505 = vmatprep.subr.mxu0 0.0
  %506 = vmatpush1.msra.mxu0 0.0
  %507 = vmatprep.subr.mxu0 0.0
  %508 = vmatpush1.msra.mxu0 0.0
  %509 = vmatprep.subr.mxu0 0.0
  %510 = vmatpush1.msra.mxu0 0.0
  %511 = vmatprep.subr.mxu0 0.0
  %512 = vmatpush1.msra.mxu0 0.0
  %513 = vmatprep.subr.mxu0 0.0
  %514 = vmatpush1.msra.mxu0 0.0
  %515 = vmatprep.subr.mxu0 0.0
  %516 = vmatpush1.msra.mxu0 0.0
  %517 = vmatprep.subr.mxu0 0.0
  %518 = vmatpush1.msra.mxu0 %v24
  %519 = vmatprep.subr.mxu0 0.0
  %520 = vmatpush1.msra.mxu0 %v23
  %521 = vmatprep.subr.mxu0 0.0
  %522 = vmatpush1.msra.mxu0 %v22
  %523 = vmatprep.subr.mxu0 0.0
  %524 = vmatpush1.msra.mxu0 %v21
  %525 = vmatprep.subr.mxu0 0.0
  %526 = vmatpush2.msra.mxu0 0.0
  %527 = vmatprep.subr.mxu0 0.0
  %528 = vmatpush2.msra.mxu0 0.0
  %529 = vmatprep.subr.mxu0 0.0
  %530 = vmatpush2.msra.mxu0 0.0
  %531 = vmatprep.subr.mxu0 0.0
  %532 = vmatpush2.msra.mxu0 0.0
  %533 = vmatprep.subr.mxu0 0.0
  %534 = vmatpush2.msra.mxu0 0.0
  %535 = vmatprep.subr.mxu0 0.0
  %536 = vmatpush2.msra.mxu0 0.0
  %537 = vmatprep.subr.mxu0 0.0
  %538 = vmatpush2.msra.mxu0 0.0
  %539 = vmatprep.subr.mxu0 0.0
  %540 = vmatpush2.msra.mxu0 0.0
  %541 = vmatprep.subr.mxu0 0.0
  %542 = vmatpush2.msra.mxu0 0.0
  %543 = vmatprep.subr.mxu0 0.0
  %544 = vmatpush2.msra.mxu0 0.0
  %545 = vmatprep.subr.mxu0 0.0
  %546 = vmatpush2.msra.mxu0 0.0
  %547 = vmatprep.subr.mxu0 0.0
  %548 = vmatpush2.msra.mxu0 0.0
  %549 = vmatprep.subr.mxu0 0.0
  %550 = vmatpush2.msra.mxu0 0.0
  %551 = vmatprep.subr.mxu0 0.0
  %552 = vmatpush2.msra.mxu0 0.0
  %553 = vmatprep.subr.mxu0 0.0
  %554 = vmatpush2.msra.mxu0 0.0
  %555 = vmatprep.subr.mxu0 0.0
  %556 = vmatpush2.msra.mxu0 0.0
  %557 = vmatprep.mubr.f32.mxu0 0.0
  %558 = vmatmul.mubr.f32.gmra.mxu0 %v491
  %v559 = vpop.f32.mrf.mxu0
  %v560 = vadd.f32 0.0, %v559
  %v561 = vpop.f32.mrf.mxu0
  %562 = vdwg.mxu0
  %v563 = vadd.f32 %v489, %v560
  %v564 = vtanh.pop %v563
  %s565 = scalar_lea.vmem %s0, 14
  %v566 = vld [vmem:[%s565] sm:$0x3]
  %v568 = vsel %vm27, %v564, 0
  %570 = vmatprep.subr.mxu0 0.0
  %571 = vmatpush1.msra.mxu0 0.0
  %572 = vmatprep.subr.mxu0 0.0
  %573 = vmatpush1.msra.mxu0 0.0
  %574 = vmatprep.subr.mxu0 0.0
  %575 = vmatpush1.msra.mxu0 0.0
  %576 = vmatprep.subr.mxu0 0.0
  %577 = vmatpush1.msra.mxu0 0.0
  %578 = vmatprep.subr.mxu0 0.0
  %579 = vmatpush1.msra.mxu0 0.0
  %580 = vmatprep.subr.mxu0 0.0
  %581 = vmatpush1.msra.mxu0 0.0
  %582 = vmatprep.subr.mxu0 0.0
  %583 = vmatpush1.msra.mxu0 0.0
  %584 = vmatprep.subr.mxu0 0.0
  %585 = vmatpush1.msra.mxu0 0.0
  %586 = vmatprep.subr.mxu0 0.0
  %587 = vmatpush1.msra.mxu0 0.0
  %588 = vmatprep.subr.mxu0 0.0
  %589 = vmatpush1.msra.mxu0 0.0
  %590 = vmatprep.subr.mxu0 0.0
  %591 = vmatpush1.msra.mxu0 0.0
  %592 = vmatprep.subr.mxu0 0.0
  %593 = vmatpush1.msra.mxu0 0.0
  %594 = vmatprep.subr.mxu0 0.0
  %595 = vmatpush1.msra.mxu0 %v24
  %596 = vmatprep.subr.mxu0 0.0
  %597 = vmatpush1.msra.mxu0 %v23
  %598 = vmatprep.subr.mxu0 0.0
  %599 = vmatpush1.msra.mxu0 %v22
  %600 = vmatprep.subr.mxu0 0.0
  %601 = vmatpush1.msra.mxu0 %v21
  %602 = vmatprep.subr.mxu0 0.0
  %603 = vmatpush2.msra.mxu0 0.0
  %604 = vmatprep.subr.mxu0 0.0
  %605 = vmatpush2.msra.mxu0 0.0
  %606 = vmatprep.subr.mxu0 0.0
  %607 = vmatpush2.msra.mxu0 0.0
  %608 = vmatprep.subr.mxu0 0.0
  %609 = vmatpush2.msra.mxu0 0.0
  %610 = vmatprep.subr.mxu0 0.0
  %611 = vmatpush2.msra.mxu0 0.0
  %612 = vmatprep.subr.mxu0 0.0
  %613 = vmatpush2.msra.mxu0 0.0
  %614 = vmatprep.subr.mxu0 0.0
  %615 = vmatpush2.msra.mxu0 0.0
  %616 = vmatprep.subr.mxu0 0.0
  %617 = vmatpush2.msra.mxu0 0.0
  %618 = vmatprep.subr.mxu0 0.0
  %619 = vmatpush2.msra.mxu0 0.0
  %620 = vmatprep.subr.mxu0 0.0
  %621 = vmatpush2.msra.mxu0 0.0
  %622 = vmatprep.subr.mxu0 0.0
  %623 = vmatpush2.msra.mxu0 0.0
  %624 = vmatprep.subr.mxu0 0.0
  %625 = vmatpush2.msra.mxu0 0.0
  %626 = vmatprep.subr.mxu0 0.0
  %627 = vmatpush2.msra.mxu0 0.0
  %628 = vmatprep.subr.mxu0 0.0
  %629 = vmatpush2.msra.mxu0 0.0
  %630 = vmatprep.subr.mxu0 0.0
  %631 = vmatpush2.msra.mxu0 0.0
  %632 = vmatprep.subr.mxu0 0.0
  %633 = vmatpush2.msra.mxu0 0.0
  %634 = vmatprep.mubr.f32.mxu0 0.0
  %635 = vmatmul.mubr.f32.gmra.mxu0 %v568
  %v636 = vpop.f32.mrf.mxu0
  %v637 = vadd.f32 0.0, %v636
  %v638 = vpop.f32.mrf.mxu0
  %639 = vdwg.mxu0
  %v640 = vadd.f32 %v566, %v637
  %v641 = vtanh.pop %v640
  %vm642 = vcmask 254976
  %643 = vst.msk [vmem:[#allocation2] sm:$0x3] %vm642, %v641
  %644 = vrot.lane.b32.xlu0 %v179, 32
  %v645 = vpop.permute.xlu0 %644
  %647 = vrot.lane.b32.xlu0 %v256, 64
  %v648 = vpop.permute.xlu0 %647
  %650 = vrot.lane.b32.xlu0 %v333, 96
  %v651 = vpop.permute.xlu0 %650
  %653 = vrot.lane.b32.xlu0 %v487, 32
  %v654 = vpop.permute.xlu0 %653
  %656 = vrot.lane.b32.xlu0 %v564, 64
  %v657 = vpop.permute.xlu0 %656
  %660 = vrot.lane.b32.xlu0 %v641, 96
  %v661 = vpop.permute.xlu0 %660
  %v663 = vsel %vm27, %v102, %v645
  %vm664 = vcmask 523264
  %v665 = vsel %vm664, %v663, %v648
  %vm666 = vcmask 785408
  %v667 = vsel %vm666, %v665, %v651
  %v668 = vsel %vm27, %v410, %v654
  %v669 = vsel %vm664, %v668, %v657
  %v670 = vsel %vm666, %v669, %v661
  %v673 = vcombine.low %v667, %v670
  %v675 = vunpack.c.l.s4 1983009808
  %v676 = vunpack.c.0.s8 %v675
  %v677 = vlaneseq
  %v678 = vshrl.u32 %v677, 7
  %v679 = vsub.s32 %v676, %v678
  %v680 = vrot.slane %v673, %v679
  %682 = vst [vmem:[%s3] sm:$0xf] %v680
  // Predicated region
  $region18: #{rnn_forward.3} parent=0 // pred_check
    _
  $region19: #{rnn_forward.3} parent=0 // pred_check_branch
    %684 = sbr.rel (0) target = $region21
  $region20: #{rnn_forward.3} parent=0 // pred_region
    _
  $region21: #{rnn_forward.3} parent=0 // pred_fallthru
    _
  // Predicated region
  $region22: #{rnn_forward.3} parent=0 // pred_check
    _
  $region23: #{rnn_forward.3} parent=0 // pred_check_branch
    %686 = sbr.rel (0) target = $region25
  $region24: #{rnn_forward.3} parent=0 // pred_region
    _
  $region25: #{rnn_forward.3} parent=0 // pred_fallthru
    _

</llo_original>
